<compile_context>
chip_gen: v5e
topology: v5e:2x2
jax: 0.10.0
libtpu: 0.0.40
codegen_flags: <defaults>
</compile_context>

<pallas_src>
import math
import jax
import jax.numpy as jnp
from jax.experimental import pallas as pl
from jax.experimental.pallas import tpu as pltpu


def _moe_linear_kernel(expert_ids_ref, x_ref, w_ref, b_ref, o_ref):
    # x_ref : (tm, in_feat)  compute_dtype -- one routed token block (full K)
    # w_ref : (in_feat, tn)  compute_dtype -- expert weight slab for this N tile
    #                                         (expert dim squeezed); stays
    #                                         resident across consecutive blocks
    #                                         routed to the same expert.
    # b_ref : (1, tn)        float32       -- expert bias tile
    # o_ref : (tm, tn)       output dtype  -- written exactly once per step
    acc = jnp.dot(x_ref[...], w_ref[...], preferred_element_type=jnp.float32)
    o_ref[...] = (acc + b_ref[...]).astype(o_ref.dtype)


def prepare_expert_params(weight, bias, compute_dtype=jnp.bfloat16):
    """One-time parameter preparation (do this at parameter-load time, NOT per
    forward call): transpose weights to (E, in_feat, out_feat) so the MXU RHS is
    lane-dense along out_feat, cast to the compute dtype, and reshape bias to
    (E, 1, out_feat) f32 so its block has a legal sublane shape."""
    # TODO(synk): for weight-BW-bound deployments, also quantize here to int8
    # (v5e/v6e int MXU) or fp8 (v7x) with a per-expert scale applied in-kernel.
    w_t = jnp.swapaxes(weight, 1, 2).astype(compute_dtype)   # (E, in, out)
    bias3 = bias.astype(jnp.float32)[:, None, :]              # (E, 1, out)
    return w_t, bias3


def _working_set_bytes(tm, in_feat, tn, cbytes, obytes):
    # double-buffered x, w, out tiles + double-buffered (tiny) bias tile
    return (2 * tm * in_feat * cbytes
            + 2 * in_feat * tn * cbytes
            + 2 * tm * tn * obytes
            + 2 * tn * 4)


def _select_tn(out_feat, in_feat, tm, cbytes, obytes, budget_bytes):
    cands = [c for c in (512, 256, 128) if out_feat % c == 0]
    if not cands:
        cands = [out_feat]   # small / odd out_feat: one full (lane-padded) tile
    for tn in cands:
        if _working_set_bytes(tm, in_feat, tn, cbytes, obytes) <= budget_bytes:
            return tn
    # TODO(synk): add a K-tiled (tk < in_feat) fallback for very large in_feat
    # where even the smallest full-K weight slab exceeds the VMEM budget.
    return cands[-1]


def fmoe_linear_forward(inp, pos, expert_ids, w_t, bias3, block_size,
                        *, out_dtype=None, tn=None,
                        vmem_budget_bytes=40 * 1024 * 1024):
    """Grouped expert linear.

    inp:        [num_tokens, in_feat]
    pos:        [num_tokens] int32  -- gather order: block b holds tokens
                                       pos[b*block_size:(b+1)*block_size]
    expert_ids: [num_blocks]  int32 -- expert per block, SORTED (expert-
                                       contiguous, as produced by FMoE routing)
    w_t:        [num_expert, in_feat, out_feat]  (from prepare_expert_params)
    bias3:      [num_expert, 1, out_feat] float32
    returns     [num_tokens, out_feat] in routed/block order.

    Note: rows of partially-filled expert blocks (padding tokens) produce
    garbage output rows; the un-scatter step must ignore them.
    """
    # TODO(synk): ranks / expert_lens / start_addrs / total_block_num /
    # remote_block_num drive cross-worker (NCCL) remote-block fetch in mix_moe;
    # this single-device kernel only handles local blocks.
    num_tokens, in_feat = inp.shape
    num_expert, in_feat_w, out_feat = w_t.shape
    assert in_feat_w == in_feat
    num_blocks = expert_ids.shape[0]
    assert num_blocks * block_size == num_tokens
    assert block_size % 8 == 0, "block_size must be a multiple of 8 (sublane)"

    compute_dtype = w_t.dtype
    if out_dtype is None:
        out_dtype = inp.dtype   # pass jnp.bfloat16 to halve output writeback
    cbytes = jnp.dtype(compute_dtype).itemsize
    obytes = jnp.dtype(out_dtype).itemsize

    # Route tokens into expert-contiguous block order (cast fused into gather).
    # TODO(synk): fuse this gather into the kernel via a pos-driven manual DMA
    # gather (memory_space=pl.ANY + per-row make_async_copy) to save one full
    # activation HBM round trip.
    x_routed = jnp.take(inp, pos, axis=0).astype(compute_dtype)

    tm = block_size
    if tn is None:
        tn = _select_tn(out_feat, in_feat, tm, cbytes, obytes, vmem_budget_bytes)
    assert out_feat % tn == 0
    num_n = out_feat // tn

    grid_spec = pltpu.PrefetchScalarGridSpec(
        num_scalar_prefetch=1,
        # n OUTER, token-block INNER: consecutive inner steps share an expert
        # (sorted expert_ids), so the full-K weight slab below stays resident.
        grid=(num_n, num_blocks),
        in_specs=[
            # routed activations: one token block, full K (re-read num_n times)
            pl.BlockSpec((tm, in_feat), lambda n, m, eids: (m, 0)),
            # expert weight slab (in_feat, tn); expert chosen via the scalar-
            # prefetched ids; block index constant across same-expert blocks
            # -> DMA elided (grouped-GEMM weight reuse).
            pl.BlockSpec((pl.Squeezed(), in_feat, tn),
                         lambda n, m, eids: (eids[m], 0, n)),
            # expert bias tile (1, tn); also elided across same-expert blocks.
            pl.BlockSpec((pl.Squeezed(), 1, tn),
                         lambda n, m, eids: (eids[m], 0, n)),
        ],
        out_specs=pl.BlockSpec((tm, tn), lambda n, m, eids: (m, n)),
    )

    working = _working_set_bytes(tm, in_feat, tn, cbytes, obytes)
    vmem_limit = int(min(max(working + 4 * 1024 * 1024, 8 * 1024 * 1024),
                         56 * 1024 * 1024))

    cost = pl.CostEstimate(
        flops=2 * num_tokens * in_feat * out_feat,
        transcendentals=0,
        bytes_accessed=int(
            num_n * num_tokens * in_feat * cbytes          # x re-read per N tile
            + num_expert * in_feat * out_feat * cbytes     # each expert weight ~once
            + num_expert * out_feat * 4                    # bias
            + num_tokens * out_feat * obytes),             # output
    )

    return pl.pallas_call(
        _moe_linear_kernel,
        out_shape=jax.ShapeDtypeStruct((num_tokens, out_feat), out_dtype),
        grid_spec=grid_spec,
        compiler_params=pltpu.CompilerParams(
            dimension_semantics=("parallel", "parallel"),
            vmem_limit_bytes=vmem_limit),
        cost_estimate=cost,
    )(expert_ids, x_routed, w_t, bias3)


def _kaiming_uniform(key, shape, fan_in, a):
    gain = math.sqrt(2.0 / (1.0 + a * a))
    bound = gain * math.sqrt(3.0 / fan_in)
    return jax.random.uniform(key, shape, jnp.float32, -bound, bound)


if __name__ == "__main__":
    # Small but MXU/lane-aligned configuration.
    num_expert = 4
    in_feat = 512
    out_feat = 256
    block_size = 128
    num_blocks = 4
    num_tokens = num_blocks * block_size

    key = jax.random.PRNGKey(0)
    k_w, k_b, k_x, k_pos, k_eid = jax.random.split(key, 5)

    # Parameter init mirroring reset_parameters (kaiming_uniform, a=sqrt(0.9)).
    # PyTorch fan_in for a (E, out, in) tensor is out_feat * in_feat.
    weight = _kaiming_uniform(k_w, (num_expert, out_feat, in_feat),
                              fan_in=out_feat * in_feat, a=math.sqrt(0.9))
    bias = _kaiming_uniform(k_b, (num_expert, out_feat),
                            fan_in=out_feat, a=math.sqrt(0.9))

    inp = jax.random.normal(k_x, (num_tokens, in_feat), jnp.float32)
    pos = jax.random.permutation(k_pos, num_tokens).astype(jnp.int32)
    # After FMoE routing, blocks are expert-contiguous -> sorted expert ids.
    expert_ids = jnp.sort(
        jax.random.randint(k_eid, (num_blocks,), 0, num_expert, dtype=jnp.int32))

    # One-time parameter prep (parameter-load time, not per forward).
    w_t, bias3 = prepare_expert_params(weight, bias, compute_dtype=jnp.bfloat16)

    out = fmoe_linear_forward(inp, pos, expert_ids, w_t, bias3, block_size)
    out = jax.block_until_ready(out)

    # Reference in plain JAX with the same bf16 rounding of x/w and f32 accum.
    # NOTE: bf16 inputs + f32 accumulation will not match an fp32 PyTorch
    # FMoELinear bit-for-bit; the tolerance below reflects that parity gap.
    x_routed = jnp.take(inp, pos, axis=0)
    xq = x_routed.astype(jnp.bfloat16).astype(jnp.float32)
    xq = xq.reshape(num_blocks, block_size, in_feat)
    wq = weight.astype(jnp.bfloat16).astype(jnp.float32)[expert_ids]
    ref = jnp.einsum("bti,boi->bto", xq, wq,
                     precision=jax.lax.Precision.HIGHEST)
    ref = ref + bias[expert_ids][:, None, :]
    ref = ref.reshape(num_tokens, out_feat)

    assert out.shape == (num_tokens, out_feat)
    max_err = float(jnp.max(jnp.abs(out - ref)))
    assert jnp.allclose(out, ref, atol=1e-3, rtol=1e-3), max_err
    print("KERNEL_OK")
</pallas_src>

<mosaic_0001>
module attributes {stable_mosaic.version = 11 : i64} {
  func.func @_moe_linear_kernel(%arg0: i32, %arg1: i32, %arg2: memref<4xi32, #tpu.memory_space<smem>>, %arg3: memref<128x512xbf16, #tpu.memory_space<vmem>>, %arg4: memref<1x512x256xbf16, #tpu.memory_space<vmem>>, %arg5: memref<1x1x256xf32, #tpu.memory_space<vmem>>, %arg6: memref<128x256xf32, #tpu.memory_space<vmem>>) attributes {dimension_semantics = [#tpu.dimension_semantics<parallel>, #tpu.dimension_semantics<parallel>], iteration_bounds = array<i64: 1, 4>, scalar_prefetch = 1 : i64, scratch_operands = 0 : i64, tpu.core_type = #tpu.core_type<tc>, window_params = [{transform_indices = @transform_0, window_bounds = array<i64: 128, 512>}, {transform_indices = @transform_1, window_bounds = array<i64: 1, 512, 256>}, {transform_indices = @transform_2, window_bounds = array<i64: 1, 1, 256>}, {transform_indices = @transform_3, window_bounds = array<i64: 128, 256>}]} {
    %c0 = arith.constant 0 : index
    %c0_0 = arith.constant 0 : index
    %0 = vector.load %arg3[%c0, %c0_0] : memref<128x512xbf16, #tpu.memory_space<vmem>>, vector<128x512xbf16>
    %c0_1 = arith.constant 0 : index
    %c0_2 = arith.constant 0 : index
    %c0_3 = arith.constant 0 : index
    %1 = vector.load %arg4[%c0_1, %c0_2, %c0_3] : memref<1x512x256xbf16, #tpu.memory_space<vmem>>, vector<1x512x256xbf16>
    %2 = vector.shape_cast %1 : vector<1x512x256xbf16> to vector<512x256xbf16>
    %cst = arith.constant dense<0.000000e+00> : vector<128x256xf32>
    %3 = tpu.matmul %0, %2, %cst {dimension_numbers = #tpu.dot_dimension_numbers<[1], [0], [0], [1], [0, 0, 1, 1], [], []>} : vector<128x512xbf16>, vector<512x256xbf16>, vector<128x256xf32> -> vector<128x256xf32>
    %c0_4 = arith.constant 0 : index
    %c0_5 = arith.constant 0 : index
    %c0_6 = arith.constant 0 : index
    %4 = vector.load %arg5[%c0_4, %c0_5, %c0_6] : memref<1x1x256xf32, #tpu.memory_space<vmem>>, vector<1x1x256xf32>
    %5 = vector.shape_cast %4 : vector<1x1x256xf32> to vector<1x256xf32>
    %6 = vector.broadcast %5 : vector<1x256xf32> to vector<128x256xf32>
    %7 = arith.addf %3, %6 : vector<128x256xf32>
    %c0_7 = arith.constant 0 : index
    %c0_8 = arith.constant 0 : index
    %8 = vector.load %arg6[%c0_7, %c0_8] : memref<128x256xf32, #tpu.memory_space<vmem>>, vector<128x256xf32>
    tpu.vector_store %arg6[%c0_7, %c0_8], %7 {strides = array<i32>} : memref<128x256xf32, #tpu.memory_space<vmem>>, vector<128x256xf32>,
    return
  }
  func.func @transform_0(%arg0: i32, %arg1: i32, %arg2: memref<4xi32, #tpu.memory_space<smem>>) -> (i32, i32) {
    %c0_i32 = arith.constant 0 : i32
    %c0_i32_0 = arith.constant 0 : i32
    return %arg1, %c0_i32 : i32, i32
  }
  func.func @transform_1(%arg0: i32, %arg1: i32, %arg2: memref<4xi32, #tpu.memory_space<smem>>) -> (i32, i32, i32) {
    %0 = arith.index_cast %arg1 : i32 to index
    %1 = memref.load %arg2[%0] : memref<4xi32, #tpu.memory_space<smem>>
    %c0_i32 = arith.constant 0 : i32
    %c0_i32_0 = arith.constant 0 : i32
    return %1, %c0_i32, %arg0 : i32, i32, i32
  }
  func.func @transform_2(%arg0: i32, %arg1: i32, %arg2: memref<4xi32, #tpu.memory_space<smem>>) -> (i32, i32, i32) {
    %0 = arith.index_cast %arg1 : i32 to index
    %1 = memref.load %arg2[%0] : memref<4xi32, #tpu.memory_space<smem>>
    %c0_i32 = arith.constant 0 : i32
    %c0_i32_0 = arith.constant 0 : i32
    return %1, %c0_i32, %arg0 : i32, i32, i32
  }
  func.func @transform_3(%arg0: i32, %arg1: i32, %arg2: memref<4xi32, #tpu.memory_space<smem>>) -> (i32, i32) {
    %c0_i32 = arith.constant 0 : i32
    return %arg1, %arg0 : i32, i32
  }
}

</mosaic_0001>

<llo_original>
// kernel: tpu_custom_call.1
$region0: #{tpu_custom_call.1}
  #allocation0 [shape = 'u32[]', space=smem, size = 0x4, offset = 0x4, fixed_abs, tag = 'smem constant byte address 0x4 - core index']
  #allocation1 [shape = 'u32[72,128]{1,0:T(1,128)}', space=vmem, size = 0x9000, scoped, tag = 'internal scratch']
  #allocation2 [shape = 's32[1]{0}', space=sflag, size = 0x4, scoped, tag = 'scoped memory for tpu_custom_call.1']
  #allocation3 [shape = 'u8[512]{0}', space=smem, size = 0x200, scoped, tag = 'prefetched SMEM operand 0']
  %s0 = inlined_call_operand.hbm [shape: s32[4], index: 0, kind: input, shape index: {}]
  %s1 = inlined_call_operand.hbm [shape: bf16[512,512], index: 1, kind: input, shape index: {}]
  %s2 = inlined_call_operand.hbm [shape: bf16[4,512,256], index: 2, kind: input, shape index: {}]
  %s3 = inlined_call_operand.hbm [shape: f32[4,1,256], index: 3, kind: input, shape index: {}]
  %s4 = inlined_call_operand.hbm [shape: f32[512,256], index: 4, kind: output, shape index: {}]
  %s5 = sld [smem:[#allocation0]]
  $region57: #{tpu_custom_call.1} parent=0
    _
  %s7 = ssub.s32 1, %s5
  %s8 = scalar_select 0, %s7, %s5
  %s10 = sshll.u32 %s0, 4
  %s11 = int_to_ptr.hbm [resolvable:$true] %s10
  %13 = dma.hbm_to_smem %s11, 16, [#allocation3], [#allocation2]
  %15 = dma.done [#allocation2], 16
  %16 = sfence
  $region1: #{tpu_custom_call.1} parent=0
    #allocation4 [shape = 'u8[262144]{0}', space=vmem, size = 0x40000, scoped, tag = 'input window, operand 1']
    #allocation5 [shape = 's32[2]{0}', space=sflag, size = 0x8, scoped, tag = 'scoped memory for tpu_custom_call.1']
    #allocation6 [shape = 's32[2]{0}', space=sflag, size = 0x8, scoped, tag = 'scoped memory for tpu_custom_call.1']
    #allocation7 [shape = 'u8[524288]{0}', space=vmem, size = 0x80000, scoped, tag = 'input window, operand 2']
    #allocation8 [shape = 's32[2]{0}', space=sflag, size = 0x8, scoped, tag = 'scoped memory for tpu_custom_call.1']
    #allocation9 [shape = 'u8[2048]{0}', space=vmem, size = 0x800, scoped, tag = 'input window, operand 3']
    #allocation10 [shape = 'u8[262144]{0}', space=vmem, size = 0x40000, scoped, tag = 'output window, operand 0']
    %17 = vsyncpa [#allocation5], 0
    %s18 = scalar_lea.sflag [#allocation5], 1
    %19 = vsyncpa %s18, 0
    %20 = vsyncpa [#allocation8], 0
    %s21 = scalar_lea.sflag [#allocation8], 1
    %22 = vsyncpa %s21, 0
    %23 = vsyncpa [#allocation6], 0
    %s24 = scalar_lea.sflag [#allocation6], 1
    %25 = vsyncpa %s24, 0
    loop: start=0, step=1, limit=6
    $region2: #{tpu_custom_call.1} parent=1 // loop_pre_header
      _
    $region3: #{tpu_custom_call.1} parent=1 // loop_header
      %s27 = sphi 0, %s31
      %p28 = scmp.ge.s32.totalorder %s27, 6
      %s34 = sphi 0, %s46
      %s35 = sphi 0, %s42
      %s36 = sphi 0, %s34
      %s37 = sphi 0, %s35
      %s38 = sphi 0, %s36
      %s39 = sphi 0, %s37
      %s49 = sphi 0, %s51
      %s52 = sphi 0, %s49
      %s53 = sphi 0, %s52
      %s69 = sphi 0, %s53
      %s79 = sphi 0, %s81
      %s82 = sphi 0, %s79
      %s83 = sphi 0, %s82
      %s99 = sphi 0, %s83
      %s109 = sphi 0, %s111
      %s112 = sphi 0, %s109
      %s113 = sphi 0, %s112
      %s129 = sphi 0, %s113
      %s137 = sphi 0, %s139
      %s140 = sphi 0, %s137
      %s141 = sphi 0, %s140
      %s157 = sphi 0, %s141
    $region4: #{tpu_custom_call.1} parent=1 // loop_header_branch
      %30 = sbr.rel (%p28) target = $region8
    $region5: #{tpu_custom_call.1} parent=1 // loop_body
      %s32 = ssub.s32 %s27, 1
      %s33 = ssub.s32 %s27, 2
      %s40 = sadd.s32 1, %s35
      %p41 = scmp.ge.s32.totalorder %s40, 4
      %s42 = scalar_select %p41, 0, %s40
      %s43 = sadd.s32 1, %s34
      %s44 = scalar_select %p41, %s43, %s34
      %p45 = scmp.ge.s32.totalorder %s44, 1
      %s46 = scalar_select %p45, 0, %s44
      %s47 = ssub.s32 %s35, %s42
      %p48 = scmp.eq.s32.totalorder %s47, 0
      %s50 = sadd.s32 %s49, 1
      %s51 = scalar_select %p48, %s49, %s50
      %p54 = pneg %p48
      %p55 = scmp.eq.s32.totalorder %s27, 3
      %p56 = por %p54, %p55
      %p57 = scmp.ne.s32.totalorder %s49, %s52
      %p58 = scmp.eq.s32.totalorder %s27, 0
      %p59 = por %p57, %p58
      %p60 = scmp.ne.s32.totalorder %s49, %s52
      %p61 = scmp.eq.s32.totalorder %s32, 3
      %p62 = por %p60, %p61
      %p63 = scmp.ne.s32.totalorder %s52, %s53
      %p64 = scmp.eq.s32.totalorder %s32, 0
      %p65 = por %p63, %p64
      %p66 = scmp.ne.s32.totalorder %s52, %s53
      %p67 = scmp.eq.s32.totalorder %s33, 3
      %p68 = por %p66, %p67
      %p70 = scmp.ne.s32.totalorder %s53, %s69
      %p71 = scmp.eq.s32.totalorder %s33, 0
      %p72 = por %p70, %p71
      %s73 = sld [smem:[#allocation3 + %s35]]
      %s74 = sld [smem:[#allocation3 + %s42]]
      %s75 = ssub.s32 %s73, %s74
      %s76 = ssub.s32 %s34, %s46
      %s77 = sor.u32 %s75, %s76
      %p78 = scmp.eq.s32.totalorder %s77, 0
      %s80 = sadd.s32 %s79, 1
      %s81 = scalar_select %p78, %s79, %s80
      %p84 = pneg %p78
      %p85 = scmp.eq.s32.totalorder %s27, 3
      %p86 = por %p84, %p85
      %p87 = scmp.ne.s32.totalorder %s79, %s82
      %p88 = scmp.eq.s32.totalorder %s27, 0
      %p89 = por %p87, %p88
      %p90 = scmp.ne.s32.totalorder %s79, %s82
      %p91 = scmp.eq.s32.totalorder %s32, 3
      %p92 = por %p90, %p91
      %p93 = scmp.ne.s32.totalorder %s82, %s83
      %p94 = scmp.eq.s32.totalorder %s32, 0
      %p95 = por %p93, %p94
      %p96 = scmp.ne.s32.totalorder %s82, %s83
      %p97 = scmp.eq.s32.totalorder %s33, 3
      %p98 = por %p96, %p97
      %p100 = scmp.ne.s32.totalorder %s83, %s99
      %p101 = scmp.eq.s32.totalorder %s33, 0
      %p102 = por %p100, %p101
      %s103 = sld [smem:[#allocation3 + %s35]]
      %s104 = sld [smem:[#allocation3 + %s42]]
      %s105 = ssub.s32 %s103, %s104
      %s106 = ssub.s32 %s34, %s46
      %s107 = sor.u32 %s105, %s106
      %p108 = scmp.eq.s32.totalorder %s107, 0
      %s110 = sadd.s32 %s109, 1
      %s111 = scalar_select %p108, %s109, %s110
      %p114 = pneg %p108
      %p115 = scmp.eq.s32.totalorder %s27, 3
      %p116 = por %p114, %p115
      %p117 = scmp.ne.s32.totalorder %s109, %s112
      %p118 = scmp.eq.s32.totalorder %s27, 0
      %p119 = por %p117, %p118
      %p120 = scmp.ne.s32.totalorder %s109, %s112
      %p121 = scmp.eq.s32.totalorder %s32, 3
      %p122 = por %p120, %p121
      %p123 = scmp.ne.s32.totalorder %s112, %s113
      %p124 = scmp.eq.s32.totalorder %s32, 0
      %p125 = por %p123, %p124
      %p126 = scmp.ne.s32.totalorder %s112, %s113
      %p127 = scmp.eq.s32.totalorder %s33, 3
      %p128 = por %p126, %p127
      %p130 = scmp.ne.s32.totalorder %s113, %s129
      %p131 = scmp.eq.s32.totalorder %s33, 0
      %p132 = por %p130, %p131
      %s133 = ssub.s32 %s35, %s42
      %s134 = ssub.s32 %s34, %s46
      %s135 = sor.u32 %s133, %s134
      %p136 = scmp.eq.s32.totalorder %s135, 0
      %s138 = sadd.s32 %s137, 1
      %s139 = scalar_select %p136, %s137, %s138
      %p142 = pneg %p136
      %p143 = scmp.eq.s32.totalorder %s27, 3
      %p144 = por %p142, %p143
      %p145 = scmp.ne.s32.totalorder %s137, %s140
      %p146 = scmp.eq.s32.totalorder %s27, 0
      %p147 = por %p145, %p146
      %p148 = scmp.ne.s32.totalorder %s137, %s140
      %p149 = scmp.eq.s32.totalorder %s32, 3
      %p150 = por %p148, %p149
      %p151 = scmp.ne.s32.totalorder %s140, %s141
      %p152 = scmp.eq.s32.totalorder %s32, 0
      %p153 = por %p151, %p152
      %p154 = scmp.ne.s32.totalorder %s140, %s141
      %p155 = scmp.eq.s32.totalorder %s33, 3
      %p156 = por %p154, %p155
      %p158 = scmp.ne.s32.totalorder %s141, %s157
      %p159 = scmp.eq.s32.totalorder %s33, 0
      %p160 = por %p158, %p159
      %p161 = scmp.le.s32.totalorder 1, %s27
      %p162 = scmp.lt.s32.totalorder %s27, 5
      %p163 = pnand %p161, %p162
      %p164 = pneg %p163
      // Predicated region
      $region9: #{tpu_custom_call.1} parent=5 // pred_check
        _
      $region10: #{tpu_custom_call.1} parent=5 // pred_check_branch
        %166 = sbr.rel (%p163) target = $region12
      $region11: #{tpu_custom_call.1} parent=5 // pred_region
        %s167 = ssub.s32 %s27, 1
      $region12: #{tpu_custom_call.1} parent=5 // pred_fallthru
        _
      %p168 = scmp.lt.s32.totalorder %s27, 4
      // Predicated region
      $region13: #{tpu_custom_call.1} parent=5 // pred_check
        %p169 = pneg %p168
      $region14: #{tpu_custom_call.1} parent=5 // pred_check_branch
        %171 = sbr.rel (%p169) target = $region16
      $region15: #{tpu_custom_call.1} parent=5 // pred_region
        // Predicated region
        $region17: #{tpu_custom_call.1} parent=15 // pred_check
          %p172 = pneg %p59
        $region18: #{tpu_custom_call.1} parent=15 // pred_check_branch
          %174 = sbr.rel (%p172) target = $region20
        $region19: #{tpu_custom_call.1} parent=15 // pred_region
          %s175 = sand.u32 %s49, 1
          %s176 = scalar_lea.sflag [#allocation5], %s175
          %s177 = sand.u32 %s49, 1
          %s178 = smul.addr %s177, 256
          %s179 = scalar_lea.vmem [#allocation4], %s178
          %s180 = smul.u32 16, %s35
          %182 = vsyncadd %s176, 0
          %s183 = smul.addr %s180, 4
          %s184 = smul.addr %s183, 4
          %s185 = scalar_lea.hbm %s1, %s184
          %s186 = sshll.u32 %s185, 4
          %s187 = int_to_ptr.hbm [resolvable:$true] %s186
          %s188 = sshll.u32 %s179, 4
          %s189 = int_to_ptr.vmem [resolvable:$true] %s188
          %194 = dma.hbm_to_vmem [thread:$0]  %s187, 4096, %s189, %s176, 256, 256, 16
        $region20: #{tpu_custom_call.1} parent=15 // pred_fallthru
          _
        // Predicated region
        $region21: #{tpu_custom_call.1} parent=15 // pred_check
          %p195 = pneg %p89
        $region22: #{tpu_custom_call.1} parent=15 // pred_check_branch
          %197 = sbr.rel (%p195) target = $region24
        $region23: #{tpu_custom_call.1} parent=15 // pred_region
          %s198 = sand.u32 %s27, 1
          %s199 = scalar_lea.sflag [#allocation8], %s198
          %s200 = sand.u32 %s79, 1
          %s201 = smul.addr %s200, 512
          %s202 = scalar_lea.vmem [#allocation7], %s201
          %s203 = sld [smem:[#allocation3 + %s35]]
          %s204 = smul.u32 2, %s34
          %206 = vsyncadd %s199, 0
          %s207 = smul.addr %s203, 128
          %s208 = sadd.s32 %s204, %s207
          %s209 = smul.addr %s208, 4
          %s210 = scalar_lea.hbm %s2, %s209
          %s211 = sshll.u32 %s210, 4
          %s212 = int_to_ptr.hbm [resolvable:$true] %s211
          %s213 = sshll.u32 %s202, 4
          %s214 = int_to_ptr.vmem [resolvable:$true] %s213
          %219 = dma.hbm_to_vmem [thread:$0]  %s212, 8192, %s214, %s199, 128, 128, 8
        $region24: #{tpu_custom_call.1} parent=15 // pred_fallthru
          _
        // Predicated region
        $region25: #{tpu_custom_call.1} parent=15 // pred_check
          %p220 = pneg %p119
        $region26: #{tpu_custom_call.1} parent=15 // pred_check_branch
          %222 = sbr.rel (%p220) target = $region28
        $region27: #{tpu_custom_call.1} parent=15 // pred_region
          %s223 = sand.u32 %s27, 1
          %s224 = scalar_lea.sflag [#allocation8], %s223
          %s225 = sand.u32 %s109, 1
          %s226 = smul.addr %s225, 2
          %s227 = scalar_lea.vmem [#allocation9], %s226
          %s228 = sld [smem:[#allocation3 + %s35]]
          %s229 = smul.u32 2, %s34
          %231 = vsyncadd %s224, 0
          %s232 = smul.addr %s228, 2
          %s233 = sadd.s32 %s229, %s232
          %s234 = scalar_lea.hbm %s3, %s233
          %s236 = sshll.u32 %s234, 4
          %s237 = int_to_ptr.hbm [resolvable:$true] %s236
          %s238 = sshll.u32 %s227, 4
          %s239 = int_to_ptr.vmem [resolvable:$true] %s238
          %241 = dma.hbm_to_vmem [thread:$0]  %s237, 32, %s239, %s224
        $region28: #{tpu_custom_call.1} parent=15 // pred_fallthru
          _
      $region16: #{tpu_custom_call.1} parent=5 // pred_fallthru
        _
      %p242 = scmp.le.s32.totalorder 1, %s27
      %p243 = scmp.lt.s32.totalorder %s27, 5
      %p244 = pnand %p242, %p243
      %p245 = pneg %p244
      // Predicated region
      $region29: #{tpu_custom_call.1} parent=5 // pred_check
        _
      $region30: #{tpu_custom_call.1} parent=5 // pred_check_branch
        %247 = sbr.rel (%p244) target = $region32
      $region31: #{tpu_custom_call.1} parent=5 // pred_region
        %s248 = ssub.s32 %s27, 1
        %s249 = sand.u32 %s52, 1
        %s250 = scalar_lea.sflag [#allocation5], %s249
        %s251 = sand.u32 %s52, 1
        %s252 = smul.addr %s251, 256
        %s253 = scalar_lea.vmem [#allocation4], %s252
        // Predicated region
        $region33: #{tpu_custom_call.1} parent=31 // pred_check
          %p254 = pneg %p65
        $region34: #{tpu_custom_call.1} parent=31 // pred_check_branch
          %256 = sbr.rel (%p254) target = $region36
        $region35: #{tpu_custom_call.1} parent=31 // pred_region
          %258 = dma.done %s250, 4096
        $region36: #{tpu_custom_call.1} parent=31 // pred_fallthru
          _
        %s259 = sand.u32 %s32, 1
        %s260 = scalar_lea.sflag [#allocation8], %s259
        %s261 = sand.u32 %s82, 1
        %s262 = smul.addr %s261, 512
        %s263 = scalar_lea.vmem [#allocation7], %s262
        // Predicated region
        $region37: #{tpu_custom_call.1} parent=31 // pred_check
          %p264 = pneg %p95
        $region38: #{tpu_custom_call.1} parent=31 // pred_check_branch
          %266 = sbr.rel (%p264) target = $region40
        $region39: #{tpu_custom_call.1} parent=31 // pred_region
          %268 = dma.done %s260, 8192
        $region40: #{tpu_custom_call.1} parent=31 // pred_fallthru
          _
        %s269 = sand.u32 %s32, 1
        %s270 = scalar_lea.sflag [#allocation8], %s269
        %s271 = sand.u32 %s112, 1
        %s272 = smul.addr %s271, 2
        %s273 = scalar_lea.vmem [#allocation9], %s272
        // Predicated region
        $region41: #{tpu_custom_call.1} parent=31 // pred_check
          %p274 = pneg %p125
        $region42: #{tpu_custom_call.1} parent=31 // pred_check_branch
          %276 = sbr.rel (%p274) target = $region44
        $region43: #{tpu_custom_call.1} parent=31 // pred_region
          %278 = dma.done %s270, 32
        $region44: #{tpu_custom_call.1} parent=31 // pred_fallthru
          _
        %s279 = sand.u32 %s52, 1
        %s280 = scalar_lea.sflag [#allocation5], %s279
        %s281 = sand.u32 %s52, 1
        %s282 = smul.addr %s281, 256
        %s283 = scalar_lea.vmem [#allocation4], %s282
        %p284 = pneg %p65
        %p285 = pneg %p62
        %s286 = sand.u32 %s32, 1
        %s287 = scalar_lea.sflag [#allocation8], %s286
        %s288 = sand.u32 %s82, 1
        %s289 = smul.addr %s288, 512
        %s290 = scalar_lea.vmem [#allocation7], %s289
        %p291 = pneg %p95
        %p292 = pneg %p92
        %s293 = sand.u32 %s32, 1
        %s294 = scalar_lea.sflag [#allocation8], %s293
        %s295 = sand.u32 %s112, 1
        %s296 = smul.addr %s295, 2
        %s297 = scalar_lea.vmem [#allocation9], %s296
        %p298 = pneg %p125
        %p299 = pneg %p122
        %p300 = pneg %p153
        %p301 = pneg %p150
        %s302 = sand.u32 %s140, 1
        %s303 = scalar_lea.sflag [#allocation6], %s302
        %s304 = sand.u32 %s140, 1
        %s305 = smul.addr %s304, 256
        %s306 = scalar_lea.vmem [#allocation10], %s305
        %s307 = smul.u32 16, %s37
        %s308 = sld [smem:[#allocation3 + %s37]]
        %s309 = smul.u32 2, %s36
        %s310 = sld [smem:[#allocation3 + %s37]]
        %s311 = smul.u32 2, %s36
        %s312 = smul.u32 16, %s37
        %s313 = smul.u32 2, %s36
        %v314 = vld [vmem:[%s253] sm:$0xff]
        %v315 = vld [vmem:[%s253 + $0x8] sm:$0xff]
        %v316 = vld [vmem:[%s253 + $0x10] sm:$0xff]
        %v317 = vld [vmem:[%s253 + $0x18] sm:$0xff]
        %v318 = vld [vmem:[%s253 + $0x20] sm:$0xff]
        %v319 = vld [vmem:[%s253 + $0x28] sm:$0xff]
        %v320 = vld [vmem:[%s253 + $0x30] sm:$0xff]
        %v321 = vld [vmem:[%s253 + $0x38] sm:$0xff]
        %v322 = vld [vmem:[%s253 + $0x40] sm:$0xff]
        %v323 = vld [vmem:[%s253 + $0x48] sm:$0xff]
        %v324 = vld [vmem:[%s253 + $0x50] sm:$0xff]
        %v325 = vld [vmem:[%s253 + $0x58] sm:$0xff]
        %v326 = vld [vmem:[%s253 + $0x60] sm:$0xff]
        %v327 = vld [vmem:[%s253 + $0x68] sm:$0xff]
        %v328 = vld [vmem:[%s253 + $0x70] sm:$0xff]
        %v329 = vld [vmem:[%s253 + $0x78] sm:$0xff]
        %v330 = vld [vmem:[%s253 + $0x80] sm:$0xff]
        %v331 = vld [vmem:[%s253 + $0x88] sm:$0xff]
        %v332 = vld [vmem:[%s253 + $0x90] sm:$0xff]
        %v333 = vld [vmem:[%s253 + $0x98] sm:$0xff]
        %v334 = vld [vmem:[%s253 + $0xa0] sm:$0xff]
        %v335 = vld [vmem:[%s253 + $0xa8] sm:$0xff]
        %v336 = vld [vmem:[%s253 + $0xb0] sm:$0xff]
        %v337 = vld [vmem:[%s253 + $0xb8] sm:$0xff]
        %v338 = vld [vmem:[%s253 + $0xc0] sm:$0xff]
        %v339 = vld [vmem:[%s253 + $0xc8] sm:$0xff]
        %v340 = vld [vmem:[%s253 + $0xd0] sm:$0xff]
        %v341 = vld [vmem:[%s253 + $0xd8] sm:$0xff]
        %v342 = vld [vmem:[%s253 + $0xe0] sm:$0xff]
        %v343 = vld [vmem:[%s253 + $0xe8] sm:$0xff]
        %v344 = vld [vmem:[%s253 + $0xf0] sm:$0xff]
        %v345 = vld [vmem:[%s253 + $0xf8] sm:$0xff]
        %v346 = vld [vmem:[%s263] sm:$0xff]
        %v347 = vld [vmem:[%s263 + $0x8] sm:$0xff]
        %v348 = vld [vmem:[%s263 + $0x10] sm:$0xff]
        %v349 = vld [vmem:[%s263 + $0x18] sm:$0xff]
        %v350 = vld [vmem:[%s263 + $0x20] sm:$0xff]
        %v351 = vld [vmem:[%s263 + $0x28] sm:$0xff]
        %v352 = vld [vmem:[%s263 + $0x30] sm:$0xff]
        %v353 = vld [vmem:[%s263 + $0x38] sm:$0xff]
        %v354 = vld [vmem:[%s263 + $0x40] sm:$0xff]
        %v355 = vld [vmem:[%s263 + $0x48] sm:$0xff]
        %v356 = vld [vmem:[%s263 + $0x50] sm:$0xff]
        %v357 = vld [vmem:[%s263 + $0x58] sm:$0xff]
        %v358 = vld [vmem:[%s263 + $0x60] sm:$0xff]
        %v359 = vld [vmem:[%s263 + $0x68] sm:$0xff]
        %v360 = vld [vmem:[%s263 + $0x70] sm:$0xff]
        %v361 = vld [vmem:[%s263 + $0x78] sm:$0xff]
        %v362 = vld [vmem:[%s263 + $0x80] sm:$0xff]
        %v363 = vld [vmem:[%s263 + $0x88] sm:$0xff]
        %v364 = vld [vmem:[%s263 + $0x90] sm:$0xff]
        %v365 = vld [vmem:[%s263 + $0x98] sm:$0xff]
        %v366 = vld [vmem:[%s263 + $0xa0] sm:$0xff]
        %v367 = vld [vmem:[%s263 + $0xa8] sm:$0xff]
        %v368 = vld [vmem:[%s263 + $0xb0] sm:$0xff]
        %v369 = vld [vmem:[%s263 + $0xb8] sm:$0xff]
        %v370 = vld [vmem:[%s263 + $0xc0] sm:$0xff]
        %v371 = vld [vmem:[%s263 + $0xc8] sm:$0xff]
        %v372 = vld [vmem:[%s263 + $0xd0] sm:$0xff]
        %v373 = vld [vmem:[%s263 + $0xd8] sm:$0xff]
        %v374 = vld [vmem:[%s263 + $0xe0] sm:$0xff]
        %v375 = vld [vmem:[%s263 + $0xe8] sm:$0xff]
        %v376 = vld [vmem:[%s263 + $0xf0] sm:$0xff]
        %v377 = vld [vmem:[%s263 + $0xf8] sm:$0xff]
        %v378 = vld [vmem:[%s263 + $0x100] sm:$0xff]
        %v379 = vld [vmem:[%s263 + $0x108] sm:$0xff]
        %v380 = vld [vmem:[%s263 + $0x110] sm:$0xff]
        %v381 = vld [vmem:[%s263 + $0x118] sm:$0xff]
        %v382 = vld [vmem:[%s263 + $0x120] sm:$0xff]
        %v383 = vld [vmem:[%s263 + $0x128] sm:$0xff]
        %v384 = vld [vmem:[%s263 + $0x130] sm:$0xff]
        %v385 = vld [vmem:[%s263 + $0x138] sm:$0xff]
        %v386 = vld [vmem:[%s263 + $0x140] sm:$0xff]
        %v387 = vld [vmem:[%s263 + $0x148] sm:$0xff]
        %v388 = vld [vmem:[%s263 + $0x150] sm:$0xff]
        %v389 = vld [vmem:[%s263 + $0x158] sm:$0xff]
        %v390 = vld [vmem:[%s263 + $0x160] sm:$0xff]
        %v391 = vld [vmem:[%s263 + $0x168] sm:$0xff]
        %v392 = vld [vmem:[%s263 + $0x170] sm:$0xff]
        %v393 = vld [vmem:[%s263 + $0x178] sm:$0xff]
        %v394 = vld [vmem:[%s263 + $0x180] sm:$0xff]
        %v395 = vld [vmem:[%s263 + $0x188] sm:$0xff]
        %v396 = vld [vmem:[%s263 + $0x190] sm:$0xff]
        %v397 = vld [vmem:[%s263 + $0x198] sm:$0xff]
        %v398 = vld [vmem:[%s263 + $0x1a0] sm:$0xff]
        %v399 = vld [vmem:[%s263 + $0x1a8] sm:$0xff]
        %v400 = vld [vmem:[%s263 + $0x1b0] sm:$0xff]
        %v401 = vld [vmem:[%s263 + $0x1b8] sm:$0xff]
        %v402 = vld [vmem:[%s263 + $0x1c0] sm:$0xff]
        %v403 = vld [vmem:[%s263 + $0x1c8] sm:$0xff]
        %v404 = vld [vmem:[%s263 + $0x1d0] sm:$0xff]
        %v405 = vld [vmem:[%s263 + $0x1d8] sm:$0xff]
        %v406 = vld [vmem:[%s263 + $0x1e0] sm:$0xff]
        %v407 = vld [vmem:[%s263 + $0x1e8] sm:$0xff]
        %v408 = vld [vmem:[%s263 + $0x1f0] sm:$0xff]
        %v409 = vld [vmem:[%s263 + $0x1f8] sm:$0xff]
        %v410 = vld [vmem:[%s273] sm:$0x3]
        %v412 = vperm.slane %v410, 0
        %v413 = vperm.slane %v410, 1
        %v448 = vunpack.c.l.b16 %v314
        %v449 = vunpack.c.h.b16 %v314
        %v450 = vunpack.c.l.b16 %v315
        %v451 = vunpack.c.h.b16 %v315
        %v452 = vunpack.c.l.b16 %v316
        %v453 = vunpack.c.h.b16 %v316
        %v454 = vunpack.c.l.b16 %v317
        %v455 = vunpack.c.h.b16 %v317
        %v456 = vunpack.c.l.b16 %v318
        %v457 = vunpack.c.h.b16 %v318
        %v458 = vunpack.c.l.b16 %v319
        %v459 = vunpack.c.h.b16 %v319
        %v460 = vunpack.c.l.b16 %v320
        %v461 = vunpack.c.h.b16 %v320
        %v462 = vunpack.c.l.b16 %v321
        %v463 = vunpack.c.h.b16 %v321
        %v464 = vunpack.c.l.b16 %v322
        %v465 = vunpack.c.h.b16 %v322
        %v466 = vunpack.c.l.b16 %v323
        %v467 = vunpack.c.h.b16 %v323
        %v468 = vunpack.c.l.b16 %v324
        %v469 = vunpack.c.h.b16 %v324
        %v470 = vunpack.c.l.b16 %v325
        %v471 = vunpack.c.h.b16 %v325
        %v472 = vunpack.c.l.b16 %v326
        %v473 = vunpack.c.h.b16 %v326
        %v474 = vunpack.c.l.b16 %v327
        %v475 = vunpack.c.h.b16 %v327
        %v476 = vunpack.c.l.b16 %v328
        %v477 = vunpack.c.h.b16 %v328
        %v478 = vunpack.c.l.b16 %v329
        %v479 = vunpack.c.h.b16 %v329
        %v480 = vunpack.c.l.b16 %v330
        %v481 = vunpack.c.h.b16 %v330
        %v482 = vunpack.c.l.b16 %v331
        %v483 = vunpack.c.h.b16 %v331
        %v484 = vunpack.c.l.b16 %v332
        %v485 = vunpack.c.h.b16 %v332
        %v486 = vunpack.c.l.b16 %v333
        %v487 = vunpack.c.h.b16 %v333
        %v488 = vunpack.c.l.b16 %v334
        %v489 = vunpack.c.h.b16 %v334
        %v490 = vunpack.c.l.b16 %v335
        %v491 = vunpack.c.h.b16 %v335
        %v492 = vunpack.c.l.b16 %v336
        %v493 = vunpack.c.h.b16 %v336
        %v494 = vunpack.c.l.b16 %v337
        %v495 = vunpack.c.h.b16 %v337
        %v496 = vunpack.c.l.b16 %v338
        %v497 = vunpack.c.h.b16 %v338
        %v498 = vunpack.c.l.b16 %v339
        %v499 = vunpack.c.h.b16 %v339
        %v500 = vunpack.c.l.b16 %v340
        %v501 = vunpack.c.h.b16 %v340
        %v502 = vunpack.c.l.b16 %v341
        %v503 = vunpack.c.h.b16 %v341
        %v504 = vunpack.c.l.b16 %v342
        %v505 = vunpack.c.h.b16 %v342
        %v506 = vunpack.c.l.b16 %v343
        %v507 = vunpack.c.h.b16 %v343
        %v508 = vunpack.c.l.b16 %v344
        %v509 = vunpack.c.h.b16 %v344
        %v510 = vunpack.c.l.b16 %v345
        %v511 = vunpack.c.h.b16 %v345
        %v512 = vpack.c.b16 %v452, %v448
        %v513 = vpack.c.b16 %v453, %v449
        %v514 = vpack.c.b16 %v454, %v450
        %v515 = vpack.c.b16 %v455, %v451
        %v516 = vpack.c.b16 %v460, %v456
        %v517 = vpack.c.b16 %v461, %v457
        %v518 = vpack.c.b16 %v462, %v458
        %v519 = vpack.c.b16 %v463, %v459
        %v520 = vpack.c.b16 %v468, %v464
        %v521 = vpack.c.b16 %v469, %v465
        %v522 = vpack.c.b16 %v470, %v466
        %v523 = vpack.c.b16 %v471, %v467
        %v524 = vpack.c.b16 %v476, %v472
        %v525 = vpack.c.b16 %v477, %v473
        %v526 = vpack.c.b16 %v478, %v474
        %v527 = vpack.c.b16 %v479, %v475
        %v528 = vpack.c.b16 %v484, %v480
        %v529 = vpack.c.b16 %v485, %v481
        %v530 = vpack.c.b16 %v486, %v482
        %v531 = vpack.c.b16 %v487, %v483
        %v532 = vpack.c.b16 %v492, %v488
        %v533 = vpack.c.b16 %v493, %v489
        %v534 = vpack.c.b16 %v494, %v490
        %v535 = vpack.c.b16 %v495, %v491
        %v536 = vpack.c.b16 %v500, %v496
        %v537 = vpack.c.b16 %v501, %v497
        %v538 = vpack.c.b16 %v502, %v498
        %v539 = vpack.c.b16 %v503, %v499
        %v540 = vpack.c.b16 %v508, %v504
        %v541 = vpack.c.b16 %v509, %v505
        %v542 = vpack.c.b16 %v510, %v506
        %v543 = vpack.c.b16 %v511, %v507
        %v640 = vunpack.c.l.b16 %v346
        %v641 = vunpack.c.h.b16 %v346
        %v642 = vunpack.c.l.b16 %v347
        %v643 = vunpack.c.h.b16 %v347
        %v644 = vunpack.c.l.b16 %v348
        %v645 = vunpack.c.h.b16 %v348
        %v646 = vunpack.c.l.b16 %v349
        %v647 = vunpack.c.h.b16 %v349
        %v648 = vunpack.c.l.b16 %v350
        %v649 = vunpack.c.h.b16 %v350
        %v650 = vunpack.c.l.b16 %v351
        %v651 = vunpack.c.h.b16 %v351
        %v652 = vunpack.c.l.b16 %v352
        %v653 = vunpack.c.h.b16 %v352
        %v654 = vunpack.c.l.b16 %v353
        %v655 = vunpack.c.h.b16 %v353
        %v656 = vunpack.c.l.b16 %v354
        %v657 = vunpack.c.h.b16 %v354
        %v658 = vunpack.c.l.b16 %v355
        %v659 = vunpack.c.h.b16 %v355
        %v660 = vunpack.c.l.b16 %v356
        %v661 = vunpack.c.h.b16 %v356
        %v662 = vunpack.c.l.b16 %v357
        %v663 = vunpack.c.h.b16 %v357
        %v664 = vunpack.c.l.b16 %v358
        %v665 = vunpack.c.h.b16 %v358
        %v666 = vunpack.c.l.b16 %v359
        %v667 = vunpack.c.h.b16 %v359
        %v668 = vunpack.c.l.b16 %v360
        %v669 = vunpack.c.h.b16 %v360
        %v670 = vunpack.c.l.b16 %v361
        %v671 = vunpack.c.h.b16 %v361
        %v672 = vunpack.c.l.b16 %v362
        %v673 = vunpack.c.h.b16 %v362
        %v674 = vunpack.c.l.b16 %v363
        %v675 = vunpack.c.h.b16 %v363
        %v676 = vunpack.c.l.b16 %v364
        %v677 = vunpack.c.h.b16 %v364
        %v678 = vunpack.c.l.b16 %v365
        %v679 = vunpack.c.h.b16 %v365
        %v680 = vunpack.c.l.b16 %v366
        %v681 = vunpack.c.h.b16 %v366
        %v682 = vunpack.c.l.b16 %v367
        %v683 = vunpack.c.h.b16 %v367
        %v684 = vunpack.c.l.b16 %v368
        %v685 = vunpack.c.h.b16 %v368
        %v686 = vunpack.c.l.b16 %v369
        %v687 = vunpack.c.h.b16 %v369
        %v688 = vunpack.c.l.b16 %v370
        %v689 = vunpack.c.h.b16 %v370
        %v690 = vunpack.c.l.b16 %v371
        %v691 = vunpack.c.h.b16 %v371
        %v692 = vunpack.c.l.b16 %v372
        %v693 = vunpack.c.h.b16 %v372
        %v694 = vunpack.c.l.b16 %v373
        %v695 = vunpack.c.h.b16 %v373
        %v696 = vunpack.c.l.b16 %v374
        %v697 = vunpack.c.h.b16 %v374
        %v698 = vunpack.c.l.b16 %v375
        %v699 = vunpack.c.h.b16 %v375
        %v700 = vunpack.c.l.b16 %v376
        %v701 = vunpack.c.h.b16 %v376
        %v702 = vunpack.c.l.b16 %v377
        %v703 = vunpack.c.h.b16 %v377
        %v704 = vunpack.c.l.b16 %v378
        %v705 = vunpack.c.h.b16 %v378
        %v706 = vunpack.c.l.b16 %v379
        %v707 = vunpack.c.h.b16 %v379
        %v708 = vunpack.c.l.b16 %v380
        %v709 = vunpack.c.h.b16 %v380
        %v710 = vunpack.c.l.b16 %v381
        %v711 = vunpack.c.h.b16 %v381
        %v712 = vunpack.c.l.b16 %v382
        %v713 = vunpack.c.h.b16 %v382
        %v714 = vunpack.c.l.b16 %v383
        %v715 = vunpack.c.h.b16 %v383
        %v716 = vunpack.c.l.b16 %v384
        %v717 = vunpack.c.h.b16 %v384
        %v718 = vunpack.c.l.b16 %v385
        %v719 = vunpack.c.h.b16 %v385
        %v720 = vunpack.c.l.b16 %v386
        %v721 = vunpack.c.h.b16 %v386
        %v722 = vunpack.c.l.b16 %v387
        %v723 = vunpack.c.h.b16 %v387
        %v724 = vunpack.c.l.b16 %v388
        %v725 = vunpack.c.h.b16 %v388
        %v726 = vunpack.c.l.b16 %v389
        %v727 = vunpack.c.h.b16 %v389
        %v728 = vunpack.c.l.b16 %v390
        %v729 = vunpack.c.h.b16 %v390
        %v730 = vunpack.c.l.b16 %v391
        %v731 = vunpack.c.h.b16 %v391
        %v732 = vunpack.c.l.b16 %v392
        %v733 = vunpack.c.h.b16 %v392
        %v734 = vunpack.c.l.b16 %v393
        %v735 = vunpack.c.h.b16 %v393
        %v736 = vunpack.c.l.b16 %v394
        %v737 = vunpack.c.h.b16 %v394
        %v738 = vunpack.c.l.b16 %v395
        %v739 = vunpack.c.h.b16 %v395
        %v740 = vunpack.c.l.b16 %v396
        %v741 = vunpack.c.h.b16 %v396
        %v742 = vunpack.c.l.b16 %v397
        %v743 = vunpack.c.h.b16 %v397
        %v744 = vunpack.c.l.b16 %v398
        %v745 = vunpack.c.h.b16 %v398
        %v746 = vunpack.c.l.b16 %v399
        %v747 = vunpack.c.h.b16 %v399
        %v748 = vunpack.c.l.b16 %v400
        %v749 = vunpack.c.h.b16 %v400
        %v750 = vunpack.c.l.b16 %v401
        %v751 = vunpack.c.h.b16 %v401
        %v752 = vunpack.c.l.b16 %v402
        %v753 = vunpack.c.h.b16 %v402
        %v754 = vunpack.c.l.b16 %v403
        %v755 = vunpack.c.h.b16 %v403
        %v756 = vunpack.c.l.b16 %v404
        %v757 = vunpack.c.h.b16 %v404
        %v758 = vunpack.c.l.b16 %v405
        %v759 = vunpack.c.h.b16 %v405
        %v760 = vunpack.c.l.b16 %v406
        %v761 = vunpack.c.h.b16 %v406
        %v762 = vunpack.c.l.b16 %v407
        %v763 = vunpack.c.h.b16 %v407
        %v764 = vunpack.c.l.b16 %v408
        %v765 = vunpack.c.h.b16 %v408
        %v766 = vunpack.c.l.b16 %v409
        %v767 = vunpack.c.h.b16 %v409
        %v768 = vpack.c.b16 %v642, %v640
        %v769 = vpack.c.b16 %v643, %v641
        %v770 = vpack.c.b16 %v646, %v644
        %v771 = vpack.c.b16 %v647, %v645
        %v772 = vpack.c.b16 %v650, %v648
        %v773 = vpack.c.b16 %v651, %v649
        %v774 = vpack.c.b16 %v654, %v652
        %v775 = vpack.c.b16 %v655, %v653
        %v776 = vpack.c.b16 %v658, %v656
        %v777 = vpack.c.b16 %v659, %v657
        %v778 = vpack.c.b16 %v662, %v660
        %v779 = vpack.c.b16 %v663, %v661
        %v780 = vpack.c.b16 %v666, %v664
        %v781 = vpack.c.b16 %v667, %v665
        %v782 = vpack.c.b16 %v670, %v668
        %v783 = vpack.c.b16 %v671, %v669
        %v784 = vpack.c.b16 %v674, %v672
        %v785 = vpack.c.b16 %v675, %v673
        %v786 = vpack.c.b16 %v678, %v676
        %v787 = vpack.c.b16 %v679, %v677
        %v788 = vpack.c.b16 %v682, %v680
        %v789 = vpack.c.b16 %v683, %v681
        %v790 = vpack.c.b16 %v686, %v684
        %v791 = vpack.c.b16 %v687, %v685
        %v792 = vpack.c.b16 %v690, %v688
        %v793 = vpack.c.b16 %v691, %v689
        %v794 = vpack.c.b16 %v694, %v692
        %v795 = vpack.c.b16 %v695, %v693
        %v796 = vpack.c.b16 %v698, %v696
        %v797 = vpack.c.b16 %v699, %v697
        %v798 = vpack.c.b16 %v702, %v700
        %v799 = vpack.c.b16 %v703, %v701
        %v800 = vpack.c.b16 %v706, %v704
        %v801 = vpack.c.b16 %v707, %v705
        %v802 = vpack.c.b16 %v710, %v708
        %v803 = vpack.c.b16 %v711, %v709
        %v804 = vpack.c.b16 %v714, %v712
        %v805 = vpack.c.b16 %v715, %v713
        %v806 = vpack.c.b16 %v718, %v716
        %v807 = vpack.c.b16 %v719, %v717
        %v808 = vpack.c.b16 %v722, %v720
        %v809 = vpack.c.b16 %v723, %v721
        %v810 = vpack.c.b16 %v726, %v724
        %v811 = vpack.c.b16 %v727, %v725
        %v812 = vpack.c.b16 %v730, %v728
        %v813 = vpack.c.b16 %v731, %v729
        %v814 = vpack.c.b16 %v734, %v732
        %v815 = vpack.c.b16 %v735, %v733
        %v816 = vpack.c.b16 %v738, %v736
        %v817 = vpack.c.b16 %v739, %v737
        %v818 = vpack.c.b16 %v742, %v740
        %v819 = vpack.c.b16 %v743, %v741
        %v820 = vpack.c.b16 %v746, %v744
        %v821 = vpack.c.b16 %v747, %v745
        %v822 = vpack.c.b16 %v750, %v748
        %v823 = vpack.c.b16 %v751, %v749
        %v824 = vpack.c.b16 %v754, %v752
        %v825 = vpack.c.b16 %v755, %v753
        %v826 = vpack.c.b16 %v758, %v756
        %v827 = vpack.c.b16 %v759, %v757
        %v828 = vpack.c.b16 %v762, %v760
        %v829 = vpack.c.b16 %v763, %v761
        %v830 = vpack.c.b16 %v766, %v764
        %v831 = vpack.c.b16 %v767, %v765
        %896 = vmatpush.bf16.msra.mxu0 %v782
        %897 = vmatpush.bf16.msra.mxu0 %v780
        %898 = vmatpush.bf16.msra.mxu0 %v778
        %899 = vmatpush.bf16.msra.mxu0 %v776
        %900 = vmatpush.bf16.msra.mxu0 %v774
        %901 = vmatpush.bf16.msra.mxu0 %v772
        %902 = vmatpush.bf16.msra.mxu0 %v770
        %903 = vmatpush.bf16.msra.mxu0 %v768
        %904 = vmatmul.bf16.gmra.mxu0 %v512
        %v905 = vpop.f32.mrf.mxu0
        %v906 = vadd.f32 %v412, %v905
        %v907 = vpop.f32.mrf.mxu0
        %v908 = vadd.f32 %v412, %v907
        %909 = vmatmul.bf16.gmra.mxu0 %v516
        %v910 = vpop.f32.mrf.mxu0
        %v911 = vadd.f32 %v412, %v910
        %v912 = vpop.f32.mrf.mxu0
        %v913 = vadd.f32 %v412, %v912
        %914 = vmatmul.bf16.gmra.mxu0 %v520
        %v915 = vpop.f32.mrf.mxu0
        %v916 = vadd.f32 %v412, %v915
        %v917 = vpop.f32.mrf.mxu0
        %v918 = vadd.f32 %v412, %v917
        %919 = vmatmul.bf16.gmra.mxu0 %v524
        %v920 = vpop.f32.mrf.mxu0
        %v921 = vadd.f32 %v412, %v920
        %v922 = vpop.f32.mrf.mxu0
        %v923 = vadd.f32 %v412, %v922
        %924 = vmatmul.bf16.gmra.mxu0 %v528
        %v925 = vpop.f32.mrf.mxu0
        %v926 = vadd.f32 %v412, %v925
        %v927 = vpop.f32.mrf.mxu0
        %v928 = vadd.f32 %v412, %v927
        %929 = vmatmul.bf16.gmra.mxu0 %v532
        %v930 = vpop.f32.mrf.mxu0
        %v931 = vadd.f32 %v412, %v930
        %v932 = vpop.f32.mrf.mxu0
        %v933 = vadd.f32 %v412, %v932
        %934 = vmatmul.bf16.gmra.mxu0 %v536
        %v935 = vpop.f32.mrf.mxu0
        %v936 = vadd.f32 %v412, %v935
        %v937 = vpop.f32.mrf.mxu0
        %v938 = vadd.f32 %v412, %v937
        %939 = vmatmul.bf16.gmra.mxu0 %v540
        %v940 = vpop.f32.mrf.mxu0
        %v941 = vadd.f32 %v412, %v940
        %v942 = vpop.f32.mrf.mxu0
        %v943 = vadd.f32 %v412, %v942
        %944 = vdwg.mxu0
        %945 = vmatpush.bf16.msra.mxu0 %v798
        %946 = vmatpush.bf16.msra.mxu0 %v796
        %947 = vmatpush.bf16.msra.mxu0 %v794
        %948 = vmatpush.bf16.msra.mxu0 %v792
        %949 = vmatpush.bf16.msra.mxu0 %v790
        %950 = vmatpush.bf16.msra.mxu0 %v788
        %951 = vmatpush.bf16.msra.mxu0 %v786
        %952 = vmatpush.bf16.msra.mxu0 %v784
        %953 = vmatmul.bf16.gmra.mxu0 %v513
        %v954 = vpop.f32.mrf.mxu0
        %v955 = vadd.f32 %v906, %v954
        %v956 = vpop.f32.mrf.mxu0
        %v957 = vadd.f32 %v908, %v956
        %958 = vmatmul.bf16.gmra.mxu0 %v517
        %v959 = vpop.f32.mrf.mxu0
        %v960 = vadd.f32 %v911, %v959
        %v961 = vpop.f32.mrf.mxu0
        %v962 = vadd.f32 %v913, %v961
        %963 = vmatmul.bf16.gmra.mxu0 %v521
        %v964 = vpop.f32.mrf.mxu0
        %v965 = vadd.f32 %v916, %v964
        %v966 = vpop.f32.mrf.mxu0
        %v967 = vadd.f32 %v918, %v966
        %968 = vmatmul.bf16.gmra.mxu0 %v525
        %v969 = vpop.f32.mrf.mxu0
        %v970 = vadd.f32 %v921, %v969
        %v971 = vpop.f32.mrf.mxu0
        %v972 = vadd.f32 %v923, %v971
        %973 = vmatmul.bf16.gmra.mxu0 %v529
        %v974 = vpop.f32.mrf.mxu0
        %v975 = vadd.f32 %v926, %v974
        %v976 = vpop.f32.mrf.mxu0
        %v977 = vadd.f32 %v928, %v976
        %978 = vmatmul.bf16.gmra.mxu0 %v533
        %v979 = vpop.f32.mrf.mxu0
        %v980 = vadd.f32 %v931, %v979
        %v981 = vpop.f32.mrf.mxu0
        %v982 = vadd.f32 %v933, %v981
        %983 = vmatmul.bf16.gmra.mxu0 %v537
        %v984 = vpop.f32.mrf.mxu0
        %v985 = vadd.f32 %v936, %v984
        %v986 = vpop.f32.mrf.mxu0
        %v987 = vadd.f32 %v938, %v986
        %988 = vmatmul.bf16.gmra.mxu0 %v541
        %v989 = vpop.f32.mrf.mxu0
        %v990 = vadd.f32 %v941, %v989
        %v991 = vpop.f32.mrf.mxu0
        %v992 = vadd.f32 %v943, %v991
        %993 = vdwg.mxu0
        %994 = vmatpush.bf16.msra.mxu0 %v814
        %995 = vmatpush.bf16.msra.mxu0 %v812
        %996 = vmatpush.bf16.msra.mxu0 %v810
        %997 = vmatpush.bf16.msra.mxu0 %v808
        %998 = vmatpush.bf16.msra.mxu0 %v806
        %999 = vmatpush.bf16.msra.mxu0 %v804
        %1000 = vmatpush.bf16.msra.mxu0 %v802
        %1001 = vmatpush.bf16.msra.mxu0 %v800
        %1002 = vmatmul.bf16.gmra.mxu0 %v514
        %v1003 = vpop.f32.mrf.mxu0
        %v1004 = vadd.f32 %v955, %v1003
        %v1005 = vpop.f32.mrf.mxu0
        %v1006 = vadd.f32 %v957, %v1005
        %1007 = vmatmul.bf16.gmra.mxu0 %v518
        %v1008 = vpop.f32.mrf.mxu0
        %v1009 = vadd.f32 %v960, %v1008
        %v1010 = vpop.f32.mrf.mxu0
        %v1011 = vadd.f32 %v962, %v1010
        %1012 = vmatmul.bf16.gmra.mxu0 %v522
        %v1013 = vpop.f32.mrf.mxu0
        %v1014 = vadd.f32 %v965, %v1013
        %v1015 = vpop.f32.mrf.mxu0
        %v1016 = vadd.f32 %v967, %v1015
        %1017 = vmatmul.bf16.gmra.mxu0 %v526
        %v1018 = vpop.f32.mrf.mxu0
        %v1019 = vadd.f32 %v970, %v1018
        %v1020 = vpop.f32.mrf.mxu0
        %v1021 = vadd.f32 %v972, %v1020
        %1022 = vmatmul.bf16.gmra.mxu0 %v530
        %v1023 = vpop.f32.mrf.mxu0
        %v1024 = vadd.f32 %v975, %v1023
        %v1025 = vpop.f32.mrf.mxu0
        %v1026 = vadd.f32 %v977, %v1025
        %1027 = vmatmul.bf16.gmra.mxu0 %v534
        %v1028 = vpop.f32.mrf.mxu0
        %v1029 = vadd.f32 %v980, %v1028
        %v1030 = vpop.f32.mrf.mxu0
        %v1031 = vadd.f32 %v982, %v1030
        %1032 = vmatmul.bf16.gmra.mxu0 %v538
        %v1033 = vpop.f32.mrf.mxu0
        %v1034 = vadd.f32 %v985, %v1033
        %v1035 = vpop.f32.mrf.mxu0
        %v1036 = vadd.f32 %v987, %v1035
        %1037 = vmatmul.bf16.gmra.mxu0 %v542
        %v1038 = vpop.f32.mrf.mxu0
        %v1039 = vadd.f32 %v990, %v1038
        %v1040 = vpop.f32.mrf.mxu0
        %v1041 = vadd.f32 %v992, %v1040
        %1042 = vdwg.mxu0
        %1043 = vmatpush.bf16.msra.mxu0 %v830
        %1044 = vmatpush.bf16.msra.mxu0 %v828
        %1045 = vmatpush.bf16.msra.mxu0 %v826
        %1046 = vmatpush.bf16.msra.mxu0 %v824
        %1047 = vmatpush.bf16.msra.mxu0 %v822
        %1048 = vmatpush.bf16.msra.mxu0 %v820
        %1049 = vmatpush.bf16.msra.mxu0 %v818
        %1050 = vmatpush.bf16.msra.mxu0 %v816
        %1051 = vmatmul.bf16.gmra.mxu0 %v515
        %v1052 = vpop.f32.mrf.mxu0
        %v1053 = vadd.f32 %v1004, %v1052
        %v1054 = vpop.f32.mrf.mxu0
        %v1055 = vadd.f32 %v1006, %v1054
        %1056 = vmatmul.bf16.gmra.mxu0 %v519
        %v1057 = vpop.f32.mrf.mxu0
        %v1058 = vadd.f32 %v1009, %v1057
        %v1059 = vpop.f32.mrf.mxu0
        %v1060 = vadd.f32 %v1011, %v1059
        %1061 = vmatmul.bf16.gmra.mxu0 %v523
        %v1062 = vpop.f32.mrf.mxu0
        %v1063 = vadd.f32 %v1014, %v1062
        %v1064 = vpop.f32.mrf.mxu0
        %v1065 = vadd.f32 %v1016, %v1064
        %1066 = vmatmul.bf16.gmra.mxu0 %v527
        %v1067 = vpop.f32.mrf.mxu0
        %v1068 = vadd.f32 %v1019, %v1067
        %v1069 = vpop.f32.mrf.mxu0
        %v1070 = vadd.f32 %v1021, %v1069
        %1071 = vmatmul.bf16.gmra.mxu0 %v531
        %v1072 = vpop.f32.mrf.mxu0
        %v1073 = vadd.f32 %v1024, %v1072
        %v1074 = vpop.f32.mrf.mxu0
        %v1075 = vadd.f32 %v1026, %v1074
        %1076 = vmatmul.bf16.gmra.mxu0 %v535
        %v1077 = vpop.f32.mrf.mxu0
        %v1078 = vadd.f32 %v1029, %v1077
        %v1079 = vpop.f32.mrf.mxu0
        %v1080 = vadd.f32 %v1031, %v1079
        %1081 = vmatmul.bf16.gmra.mxu0 %v539
        %v1082 = vpop.f32.mrf.mxu0
        %v1083 = vadd.f32 %v1034, %v1082
        %v1084 = vpop.f32.mrf.mxu0
        %v1085 = vadd.f32 %v1036, %v1084
        %1086 = vmatmul.bf16.gmra.mxu0 %v543
        %v1087 = vpop.f32.mrf.mxu0
        %v1088 = vadd.f32 %v1039, %v1087
        %v1089 = vpop.f32.mrf.mxu0
        %v1090 = vadd.f32 %v1041, %v1089
        %1091 = vdwg.mxu0
        %1092 = vmatpush.bf16.msra.mxu0 %v783
        %1093 = vmatpush.bf16.msra.mxu0 %v781
        %1094 = vmatpush.bf16.msra.mxu0 %v779
        %1095 = vmatpush.bf16.msra.mxu0 %v777
        %1096 = vmatpush.bf16.msra.mxu0 %v775
        %1097 = vmatpush.bf16.msra.mxu0 %v773
        %1098 = vmatpush.bf16.msra.mxu0 %v771
        %1099 = vmatpush.bf16.msra.mxu0 %v769
        %1100 = vmatmul.bf16.gmra.mxu0 %v512
        %v1101 = vpop.f32.mrf.mxu0
        %v1102 = vadd.f32 %v413, %v1101
        %v1103 = vpop.f32.mrf.mxu0
        %v1104 = vadd.f32 %v413, %v1103
        %1105 = vmatmul.bf16.gmra.mxu0 %v516
        %v1106 = vpop.f32.mrf.mxu0
        %v1107 = vadd.f32 %v413, %v1106
        %v1108 = vpop.f32.mrf.mxu0
        %v1109 = vadd.f32 %v413, %v1108
        %1110 = vmatmul.bf16.gmra.mxu0 %v520
        %v1111 = vpop.f32.mrf.mxu0
        %v1112 = vadd.f32 %v413, %v1111
        %v1113 = vpop.f32.mrf.mxu0
        %v1114 = vadd.f32 %v413, %v1113
        %1115 = vmatmul.bf16.gmra.mxu0 %v524
        %v1116 = vpop.f32.mrf.mxu0
        %v1117 = vadd.f32 %v413, %v1116
        %v1118 = vpop.f32.mrf.mxu0
        %v1119 = vadd.f32 %v413, %v1118
        %1120 = vmatmul.bf16.gmra.mxu0 %v528
        %v1121 = vpop.f32.mrf.mxu0
        %v1122 = vadd.f32 %v413, %v1121
        %v1123 = vpop.f32.mrf.mxu0
        %v1124 = vadd.f32 %v413, %v1123
        %1125 = vmatmul.bf16.gmra.mxu0 %v532
        %v1126 = vpop.f32.mrf.mxu0
        %v1127 = vadd.f32 %v413, %v1126
        %v1128 = vpop.f32.mrf.mxu0
        %v1129 = vadd.f32 %v413, %v1128
        %1130 = vmatmul.bf16.gmra.mxu0 %v536
        %v1131 = vpop.f32.mrf.mxu0
        %v1132 = vadd.f32 %v413, %v1131
        %v1133 = vpop.f32.mrf.mxu0
        %v1134 = vadd.f32 %v413, %v1133
        %1135 = vmatmul.bf16.gmra.mxu0 %v540
        %v1136 = vpop.f32.mrf.mxu0
        %v1137 = vadd.f32 %v413, %v1136
        %v1138 = vpop.f32.mrf.mxu0
        %v1139 = vadd.f32 %v413, %v1138
        %1140 = vdwg.mxu0
        %1141 = vmatpush.bf16.msra.mxu0 %v799
        %1142 = vmatpush.bf16.msra.mxu0 %v797
        %1143 = vmatpush.bf16.msra.mxu0 %v795
        %1144 = vmatpush.bf16.msra.mxu0 %v793
        %1145 = vmatpush.bf16.msra.mxu0 %v791
        %1146 = vmatpush.bf16.msra.mxu0 %v789
        %1147 = vmatpush.bf16.msra.mxu0 %v787
        %1148 = vmatpush.bf16.msra.mxu0 %v785
        %1149 = vmatmul.bf16.gmra.mxu0 %v513
        %v1150 = vpop.f32.mrf.mxu0
        %v1151 = vadd.f32 %v1102, %v1150
        %v1152 = vpop.f32.mrf.mxu0
        %v1153 = vadd.f32 %v1104, %v1152
        %1154 = vmatmul.bf16.gmra.mxu0 %v517
        %v1155 = vpop.f32.mrf.mxu0
        %v1156 = vadd.f32 %v1107, %v1155
        %v1157 = vpop.f32.mrf.mxu0
        %v1158 = vadd.f32 %v1109, %v1157
        %1159 = vmatmul.bf16.gmra.mxu0 %v521
        %v1160 = vpop.f32.mrf.mxu0
        %v1161 = vadd.f32 %v1112, %v1160
        %v1162 = vpop.f32.mrf.mxu0
        %v1163 = vadd.f32 %v1114, %v1162
        %1164 = vmatmul.bf16.gmra.mxu0 %v525
        %v1165 = vpop.f32.mrf.mxu0
        %v1166 = vadd.f32 %v1117, %v1165
        %v1167 = vpop.f32.mrf.mxu0
        %v1168 = vadd.f32 %v1119, %v1167
        %1169 = vmatmul.bf16.gmra.mxu0 %v529
        %v1170 = vpop.f32.mrf.mxu0
        %v1171 = vadd.f32 %v1122, %v1170
        %v1172 = vpop.f32.mrf.mxu0
        %v1173 = vadd.f32 %v1124, %v1172
        %1174 = vmatmul.bf16.gmra.mxu0 %v533
        %v1175 = vpop.f32.mrf.mxu0
        %v1176 = vadd.f32 %v1127, %v1175
        %v1177 = vpop.f32.mrf.mxu0
        %v1178 = vadd.f32 %v1129, %v1177
        %1179 = vmatmul.bf16.gmra.mxu0 %v537
        %v1180 = vpop.f32.mrf.mxu0
        %v1181 = vadd.f32 %v1132, %v1180
        %v1182 = vpop.f32.mrf.mxu0
        %v1183 = vadd.f32 %v1134, %v1182
        %1184 = vmatmul.bf16.gmra.mxu0 %v541
        %v1185 = vpop.f32.mrf.mxu0
        %v1186 = vadd.f32 %v1137, %v1185
        %v1187 = vpop.f32.mrf.mxu0
        %v1188 = vadd.f32 %v1139, %v1187
        %1189 = vdwg.mxu0
        %1190 = vmatpush.bf16.msra.mxu0 %v815
        %1191 = vmatpush.bf16.msra.mxu0 %v813
        %1192 = vmatpush.bf16.msra.mxu0 %v811
        %1193 = vmatpush.bf16.msra.mxu0 %v809
        %1194 = vmatpush.bf16.msra.mxu0 %v807
        %1195 = vmatpush.bf16.msra.mxu0 %v805
        %1196 = vmatpush.bf16.msra.mxu0 %v803
        %1197 = vmatpush.bf16.msra.mxu0 %v801
        %1198 = vmatmul.bf16.gmra.mxu0 %v514
        %v1199 = vpop.f32.mrf.mxu0
        %v1200 = vadd.f32 %v1151, %v1199
        %v1201 = vpop.f32.mrf.mxu0
        %v1202 = vadd.f32 %v1153, %v1201
        %1203 = vmatmul.bf16.gmra.mxu0 %v518
        %v1204 = vpop.f32.mrf.mxu0
        %v1205 = vadd.f32 %v1156, %v1204
        %v1206 = vpop.f32.mrf.mxu0
        %v1207 = vadd.f32 %v1158, %v1206
        %1208 = vmatmul.bf16.gmra.mxu0 %v522
        %v1209 = vpop.f32.mrf.mxu0
        %v1210 = vadd.f32 %v1161, %v1209
        %v1211 = vpop.f32.mrf.mxu0
        %v1212 = vadd.f32 %v1163, %v1211
        %1213 = vmatmul.bf16.gmra.mxu0 %v526
        %v1214 = vpop.f32.mrf.mxu0
        %v1215 = vadd.f32 %v1166, %v1214
        %v1216 = vpop.f32.mrf.mxu0
        %v1217 = vadd.f32 %v1168, %v1216
        %1218 = vmatmul.bf16.gmra.mxu0 %v530
        %v1219 = vpop.f32.mrf.mxu0
        %v1220 = vadd.f32 %v1171, %v1219
        %v1221 = vpop.f32.mrf.mxu0
        %v1222 = vadd.f32 %v1173, %v1221
        %1223 = vmatmul.bf16.gmra.mxu0 %v534
        %v1224 = vpop.f32.mrf.mxu0
        %v1225 = vadd.f32 %v1176, %v1224
        %v1226 = vpop.f32.mrf.mxu0
        %v1227 = vadd.f32 %v1178, %v1226
        %1228 = vmatmul.bf16.gmra.mxu0 %v538
        %v1229 = vpop.f32.mrf.mxu0
        %v1230 = vadd.f32 %v1181, %v1229
        %v1231 = vpop.f32.mrf.mxu0
        %v1232 = vadd.f32 %v1183, %v1231
        %1233 = vmatmul.bf16.gmra.mxu0 %v542
        %v1234 = vpop.f32.mrf.mxu0
        %v1235 = vadd.f32 %v1186, %v1234
        %v1236 = vpop.f32.mrf.mxu0
        %v1237 = vadd.f32 %v1188, %v1236
        %1238 = vdwg.mxu0
        %1239 = vmatpush.bf16.msra.mxu0 %v831
        %1240 = vmatpush.bf16.msra.mxu0 %v829
        %1241 = vmatpush.bf16.msra.mxu0 %v827
        %1242 = vmatpush.bf16.msra.mxu0 %v825
        %1243 = vmatpush.bf16.msra.mxu0 %v823
        %1244 = vmatpush.bf16.msra.mxu0 %v821
        %1245 = vmatpush.bf16.msra.mxu0 %v819
        %1246 = vmatpush.bf16.msra.mxu0 %v817
        %1247 = vmatmul.bf16.gmra.mxu0 %v515
        %v1248 = vpop.f32.mrf.mxu0
        %v1249 = vadd.f32 %v1200, %v1248
        %v1250 = vpop.f32.mrf.mxu0
        %v1251 = vadd.f32 %v1202, %v1250
        %1252 = vmatmul.bf16.gmra.mxu0 %v519
        %v1253 = vpop.f32.mrf.mxu0
        %v1254 = vadd.f32 %v1205, %v1253
        %v1255 = vpop.f32.mrf.mxu0
        %v1256 = vadd.f32 %v1207, %v1255
        %1257 = vmatmul.bf16.gmra.mxu0 %v523
        %v1258 = vpop.f32.mrf.mxu0
        %v1259 = vadd.f32 %v1210, %v1258
        %v1260 = vpop.f32.mrf.mxu0
        %v1261 = vadd.f32 %v1212, %v1260
        %1262 = vmatmul.bf16.gmra.mxu0 %v527
        %v1263 = vpop.f32.mrf.mxu0
        %v1264 = vadd.f32 %v1215, %v1263
        %v1265 = vpop.f32.mrf.mxu0
        %v1266 = vadd.f32 %v1217, %v1265
        %1267 = vmatmul.bf16.gmra.mxu0 %v531
        %v1268 = vpop.f32.mrf.mxu0
        %v1269 = vadd.f32 %v1220, %v1268
        %v1270 = vpop.f32.mrf.mxu0
        %v1271 = vadd.f32 %v1222, %v1270
        %1272 = vmatmul.bf16.gmra.mxu0 %v535
        %v1273 = vpop.f32.mrf.mxu0
        %v1274 = vadd.f32 %v1225, %v1273
        %v1275 = vpop.f32.mrf.mxu0
        %v1276 = vadd.f32 %v1227, %v1275
        %1277 = vmatmul.bf16.gmra.mxu0 %v539
        %v1278 = vpop.f32.mrf.mxu0
        %v1279 = vadd.f32 %v1230, %v1278
        %v1280 = vpop.f32.mrf.mxu0
        %v1281 = vadd.f32 %v1232, %v1280
        %1282 = vmatmul.bf16.gmra.mxu0 %v543
        %v1283 = vpop.f32.mrf.mxu0
        %v1284 = vadd.f32 %v1235, %v1283
        %v1285 = vpop.f32.mrf.mxu0
        %v1286 = vadd.f32 %v1237, %v1285
        %1287 = vdwg.mxu0
        %1288 = vst [vmem:[%s306] sm:$0xff] %v1053
        %1289 = vst [vmem:[%s306 + $0x8] sm:$0xff] %v1249
        %1290 = vst [vmem:[%s306 + $0x10] sm:$0xff] %v1055
        %1291 = vst [vmem:[%s306 + $0x18] sm:$0xff] %v1251
        %1292 = vst [vmem:[%s306 + $0x20] sm:$0xff] %v1058
        %1293 = vst [vmem:[%s306 + $0x28] sm:$0xff] %v1254
        %1294 = vst [vmem:[%s306 + $0x30] sm:$0xff] %v1060
        %1295 = vst [vmem:[%s306 + $0x38] sm:$0xff] %v1256
        %1296 = vst [vmem:[%s306 + $0x40] sm:$0xff] %v1063
        %1297 = vst [vmem:[%s306 + $0x48] sm:$0xff] %v1259
        %1298 = vst [vmem:[%s306 + $0x50] sm:$0xff] %v1065
        %1299 = vst [vmem:[%s306 + $0x58] sm:$0xff] %v1261
        %1300 = vst [vmem:[%s306 + $0x60] sm:$0xff] %v1068
        %1301 = vst [vmem:[%s306 + $0x68] sm:$0xff] %v1264
        %1302 = vst [vmem:[%s306 + $0x70] sm:$0xff] %v1070
        %1303 = vst [vmem:[%s306 + $0x78] sm:$0xff] %v1266
        %1304 = vst [vmem:[%s306 + $0x80] sm:$0xff] %v1073
        %1305 = vst [vmem:[%s306 + $0x88] sm:$0xff] %v1269
        %1306 = vst [vmem:[%s306 + $0x90] sm:$0xff] %v1075
        %1307 = vst [vmem:[%s306 + $0x98] sm:$0xff] %v1271
        %1308 = vst [vmem:[%s306 + $0xa0] sm:$0xff] %v1078
        %1309 = vst [vmem:[%s306 + $0xa8] sm:$0xff] %v1274
        %1310 = vst [vmem:[%s306 + $0xb0] sm:$0xff] %v1080
        %1311 = vst [vmem:[%s306 + $0xb8] sm:$0xff] %v1276
        %1312 = vst [vmem:[%s306 + $0xc0] sm:$0xff] %v1083
        %1313 = vst [vmem:[%s306 + $0xc8] sm:$0xff] %v1279
        %1314 = vst [vmem:[%s306 + $0xd0] sm:$0xff] %v1085
        %1315 = vst [vmem:[%s306 + $0xd8] sm:$0xff] %v1281
        %1316 = vst [vmem:[%s306 + $0xe0] sm:$0xff] %v1088
        %1317 = vst [vmem:[%s306 + $0xe8] sm:$0xff] %v1284
        %1318 = vst [vmem:[%s306 + $0xf0] sm:$0xff] %v1090
        %1319 = vst [vmem:[%s306 + $0xf8] sm:$0xff] %v1286
        %s1320 = sand.u32 %s140, 1
        %s1321 = scalar_lea.sflag [#allocation6], %s1320
        %s1322 = sand.u32 %s140, 1
        %s1323 = smul.addr %s1322, 256
        %s1324 = scalar_lea.vmem [#allocation10], %s1323
        // Predicated region
        $region45: #{tpu_custom_call.1} parent=31 // pred_check
          %p1325 = pneg %p150
        $region46: #{tpu_custom_call.1} parent=31 // pred_check_branch
          %1327 = sbr.rel (%p1325) target = $region48
        $region47: #{tpu_custom_call.1} parent=31 // pred_region
          %s1328 = smul.u32 16, %s37
          %s1329 = smul.u32 2, %s36
          %1331 = vsyncadd %s1321, 0
          %s1332 = smul.addr %s1328, 2
          %s1333 = sadd.s32 %s1329, %s1332
          %s1334 = smul.addr %s1333, 8
          %s1335 = scalar_lea.hbm %s4, %s1334
          %s1336 = sshll.u32 %s1324, 4
          %s1337 = int_to_ptr.vmem [resolvable:$true] %s1336
          %s1338 = sshll.u32 %s1335, 4
          %s1339 = int_to_ptr.hbm [resolvable:$true] %s1338
          %1344 = dma.vmem_to_hbm [thread:$0]  %s1337, 4096, %s1339, %s1321, 256, 256, 16
        $region48: #{tpu_custom_call.1} parent=31 // pred_fallthru
          _
      $region32: #{tpu_custom_call.1} parent=5 // pred_fallthru
        _
      %p1345 = scmp.le.s32.totalorder 2, %s27
      // Predicated region
      $region49: #{tpu_custom_call.1} parent=5 // pred_check
        %p1346 = pneg %p1345
      $region50: #{tpu_custom_call.1} parent=5 // pred_check_branch
        %1348 = sbr.rel (%p1346) target = $region52
      $region51: #{tpu_custom_call.1} parent=5 // pred_region
        %s1349 = ssub.s32 %s27, 2
        // Predicated region
        $region53: #{tpu_custom_call.1} parent=51 // pred_check
          %p1350 = pneg %p156
        $region54: #{tpu_custom_call.1} parent=51 // pred_check_branch
          %1352 = sbr.rel (%p1350) target = $region56
        $region55: #{tpu_custom_call.1} parent=51 // pred_region
          %s1353 = sand.u32 %s141, 1
          %s1354 = scalar_lea.sflag [#allocation6], %s1353
          %s1355 = sand.u32 %s141, 1
          %s1356 = smul.addr %s1355, 256
          %s1357 = scalar_lea.vmem [#allocation10], %s1356
          %1359 = dma.done %s1354, 4096
        $region56: #{tpu_custom_call.1} parent=51 // pred_fallthru
          _
      $region52: #{tpu_custom_call.1} parent=5 // pred_fallthru
        _
    $region6: #{tpu_custom_call.1} parent=1 // loop_footer
      %s31 = sadd.s32 1, %s27
    $region7: #{tpu_custom_call.1} parent=1 // loop_footer_branch
      %26 = sbr.rel target = $region3
    $region8: #{tpu_custom_call.1} parent=1 // loop_exit
      _
    %1360 = vsyncpa [#allocation5], 1
    %s1361 = scalar_lea.sflag [#allocation5], 1
    %1362 = vsyncpa %s1361, 1
    %1363 = vsyncpa [#allocation8], 1
    %s1364 = scalar_lea.sflag [#allocation8], 1
    %1365 = vsyncpa %s1364, 1
    %1366 = vsyncpa [#allocation6], 1
    %s1367 = scalar_lea.sflag [#allocation6], 1
    %1368 = vsyncpa %s1367, 1

</llo_original>
